<compile_context>
chip_gen: v5e
topology: v5e:2x2
jax: 0.10.0
libtpu: 0.0.40
codegen_flags: <defaults>
</compile_context>

<pallas_src>
import functools

import jax
import jax.numpy as jnp
import numpy as np
from jax.experimental import pallas as pl
from jax.experimental.pallas import tpu as pltpu

# ----------------------------- problem sizes -------------------------------
B = 2        # batch
K = 16       # spatial grid points (periodic)
C = 4        # channels (J+1 in the L96 emulator)
H = 32       # hidden channels of the inner model
KS = 5       # conv kernel size
PAD = KS // 2
DT = 0.05    # RK4 time step


# ---------------- block-circulant weight construction (host) ----------------
def make_circulant(w, k_dim, c_in, c_out, ks=KS, pad=PAD):
    """Fold a circular cross-correlation (tap-major weights) into a dense
    block-circulant matrix.

    w: (ks*c_in, c_out), tap-major (rows j*c_in + c correspond to tap j,
       input channel c).  Returns Wc of shape (k_dim*c_in, k_dim*c_out) with
       x_flat @ Wc == circular_conv(x) flattened, where
       x_flat[b, m*c_in + c] = x[b, m, c] and the output is indexed
       [b, k*c_out + o].
    """
    w_t = w.reshape(ks, c_in, c_out)
    w_pad = jnp.concatenate(
        [w_t, jnp.zeros((k_dim - ks, c_in, c_out), w.dtype)], axis=0)
    m = jnp.arange(k_dim)[:, None]
    k = jnp.arange(k_dim)[None, :]
    idx = (m - k + pad) % k_dim                  # tap j contributing to (m, k)
    blocks = w_pad[idx]                          # (K, K, c_in, c_out)
    return blocks.transpose(0, 2, 1, 3).reshape(k_dim * c_in, k_dim * c_out)


def make_circulant_params(w1, b1, w2, b2, k_dim=K, c=C, h=H,
                          mm_dtype=jnp.float32):
    """Precompute circulant weights (in the matmul dtype) + position-tiled
    f32 biases."""
    w1c = make_circulant(w1, k_dim, c, h).astype(mm_dtype)         # (K*C, K*H)
    w2c = make_circulant(w2, k_dim, h, c).astype(mm_dtype)         # (K*H, K*C)
    b1f = jnp.tile(b1.reshape(-1), k_dim).reshape(1, k_dim * h).astype(jnp.float32)
    b2f = jnp.tile(b2.reshape(-1), k_dim).reshape(1, k_dim * c).astype(jnp.float32)
    return w1c, b1f, w2c, b2f


# ------------------------------- kernel ------------------------------------
def rk4_kernel(x_ref, w1_ref, b1_ref, w2_ref, b2_ref, o_ref, state_ref,
               *, dt, mm_dtype):
    t = pl.program_id(0)

    # Initialize the carried state from the input on the first grid step only.
    @pl.when(t == 0)
    def _():
        state_ref[...] = x_ref[...]

    x = state_ref[...]                     # (B, K*C) f32, lane-dense

    def model_fwd(v):
        # circular conv1 + ReLU + circular conv2 as two plain MXU matmuls.
        # Weights are read per-use (not hoisted) so Mosaic can re-load them
        # instead of keeping 64 vregs of weights live across the kernel.
        # Matmul operands may be bf16; accumulation + elementwise stay f32.
        h = jnp.dot(v.astype(mm_dtype), w1_ref[...],
                    preferred_element_type=jnp.float32)
        h = jnp.maximum(h + b1_ref[...], 0.0)          # implicit 1-row bcast
        f = jnp.dot(h.astype(mm_dtype), w2_ref[...],
                    preferred_element_type=jnp.float32)
        return f + b2_ref[...]

    f0 = model_fwd(x)
    f1 = model_fwd(x + (dt * 0.5) * f0)
    f2 = model_fwd(x + (dt * 0.5) * f1)
    f3 = model_fwd(x + dt * f2)
    x_new = x + (dt / 6.0) * (f0 + 2.0 * (f1 + f2) + f3)

    state_ref[...] = x_new                 # carry to the next grid step
    o_ref[0] = x_new                       # per-step trajectory output


# ------------------------------- wrapper ------------------------------------
@functools.partial(jax.jit, static_argnames=("dt", "n_steps"))
def rk4_rollout(x, w1c, b1f, w2c, b2f, dt=DT, n_steps=1):
    """Run n_steps RK4 steps; returns the full trajectory (n_steps, B, K, C).

    grid=(n_steps,) "arbitrary": weights/biases/initial state have constant
    index_maps (DMA'd once, VMEM-resident); the state is carried in a VMEM
    scratch across grid iterations.
    """
    bdim, kdim, cdim = x.shape
    n = kdim * cdim
    x2 = x.reshape(bdim, n).astype(jnp.float32)       # lane-dense (B, 64)
    kernel = functools.partial(rk4_kernel, dt=float(dt), mm_dtype=w1c.dtype)

    traj = pl.pallas_call(
        kernel,
        out_shape=jax.ShapeDtypeStruct((n_steps, bdim, n), jnp.float32),
        grid_spec=pltpu.PrefetchScalarGridSpec(
            num_scalar_prefetch=0,
            grid=(n_steps,),
            in_specs=[
                pl.BlockSpec((bdim, n), lambda t: (0, 0)),      # x0
                pl.BlockSpec(w1c.shape, lambda t: (0, 0)),      # W1 circulant
                pl.BlockSpec(b1f.shape, lambda t: (0, 0)),      # b1 (f32)
                pl.BlockSpec(w2c.shape, lambda t: (0, 0)),      # W2 circulant
                pl.BlockSpec(b2f.shape, lambda t: (0, 0)),      # b2 (f32)
            ],
            out_specs=pl.BlockSpec((1, bdim, n), lambda t: (t, 0, 0)),
            scratch_shapes=[pltpu.VMEM((bdim, n), jnp.float32)],
        ),
        compiler_params=pltpu.CompilerParams(
            dimension_semantics=("arbitrary",)),
    )(x2, w1c, b1f, w2c, b2f)
    return traj.reshape(n_steps, bdim, kdim, cdim)


def rk4_forward(x, w1c, b1f, w2c, b2f, dt=DT):
    """Single RK4 step == Model_forwarder_rk4default.forward."""
    return rk4_rollout(x, w1c, b1f, w2c, b2f, dt=dt, n_steps=1)[0]


# ------------------------- pure-JAX reference -------------------------------
def _circ_gather_ref(v, taps, pad):
    kdim = v.shape[1]
    parts = []
    for j in range(taps):
        s = (pad - j) % kdim
        if s == 0:
            parts.append(v)
        else:
            parts.append(
                jnp.concatenate([v[:, kdim - s:, :], v[:, :kdim - s, :]], axis=1))
    return jnp.concatenate(parts, axis=-1)


def _ref_model_fwd(v, w1, b1, w2, b2):
    g = _circ_gather_ref(v, KS, PAD).reshape(v.shape[0] * v.shape[1], KS * v.shape[2])
    h = jnp.maximum(g @ w1 + b1, 0.0).reshape(v.shape[0], v.shape[1], -1)
    g2 = _circ_gather_ref(h, KS, PAD).reshape(v.shape[0] * v.shape[1], KS * h.shape[2])
    return (g2 @ w2 + b2).reshape(v.shape)


def _ref_rk4(x, w1, b1, w2, b2, dt):
    f0 = _ref_model_fwd(x, w1, b1, w2, b2)
    f1 = _ref_model_fwd(x + dt / 2.0 * f0, w1, b1, w2, b2)
    f2 = _ref_model_fwd(x + dt / 2.0 * f1, w1, b1, w2, b2)
    f3 = _ref_model_fwd(x + dt * f2, w1, b1, w2, b2)
    return x + dt / 6.0 * (f0 + 2.0 * (f1 + f2) + f3)


# --------------------------------- main --------------------------------------
if __name__ == "__main__":
    key = jax.random.PRNGKey(0)
    kx, kw1, kb1, kw2, kb2 = jax.random.split(key, 5)

    # deterministic synthetic parameters for the inner model (tap-major conv weights)
    w1 = 0.1 * jax.random.normal(kw1, (KS * C, H), dtype=jnp.float32)
    b1 = 0.1 * jax.random.normal(kb1, (1, H), dtype=jnp.float32)
    w2 = 0.1 * jax.random.normal(kw2, (KS * H, C), dtype=jnp.float32)
    b2 = 0.1 * jax.random.normal(kb2, (1, C), dtype=jnp.float32)

    # input state: (B, K, C) channels-last (equiv. to torch NCW transposed)
    x = jax.random.normal(kx, (B, K, C), dtype=jnp.float32)

    # ---- f32 path: exact single-step check against the PyTorch semantics ----
    p32 = make_circulant_params(w1, b1, w2, b2, mm_dtype=jnp.float32)
    out32 = jax.block_until_ready(rk4_forward(x, *p32, dt=DT))
    ref1 = _ref_rk4(x, w1, b1, w2, b2, DT)
    np.testing.assert_allclose(np.asarray(out32), np.asarray(ref1),
                               rtol=1e-4, atol=1e-5)

    # ---- f32 path: 4-step rollout (grid-over-time, VMEM-carried state) ----
    n_roll = 4
    traj = jax.block_until_ready(rk4_rollout(x, *p32, dt=DT, n_steps=n_roll))
    ref_roll = x
    for _ in range(n_roll):
        ref_roll = _ref_rk4(ref_roll, w1, b1, w2, b2, DT)
    np.testing.assert_allclose(np.asarray(traj[-1]), np.asarray(ref_roll),
                               rtol=1e-3, atol=5e-4)

    # ---- bf16 matmul-operand path (perf path; RK4/elementwise math in f32) ----
    p16 = make_circulant_params(w1, b1, w2, b2, mm_dtype=jnp.bfloat16)
    out16 = jax.block_until_ready(rk4_forward(x, *p16, dt=DT))
    np.testing.assert_allclose(np.asarray(out16), np.asarray(ref1),
                               rtol=5e-3, atol=2e-3)

    print("KERNEL_OK")
</pallas_src>

<mosaic_0001>
module attributes {stable_mosaic.version = 11 : i64} {
  func.func @rk4_kernel(%arg0: i32, %arg1: memref<2x64xf32, #tpu.memory_space<vmem>>, %arg2: memref<64x512xf32, #tpu.memory_space<vmem>>, %arg3: memref<1x512xf32, #tpu.memory_space<vmem>>, %arg4: memref<512x64xf32, #tpu.memory_space<vmem>>, %arg5: memref<1x64xf32, #tpu.memory_space<vmem>>, %arg6: memref<1x2x64xf32, #tpu.memory_space<vmem>>, %arg7: memref<2x64xf32, #tpu.memory_space<vmem>>) attributes {dimension_semantics = [#tpu.dimension_semantics<arbitrary>], iteration_bounds = array<i64: 1>, scalar_prefetch = 0 : i64, scratch_operands = 1 : i64, tpu.core_type = #tpu.core_type<tc>, window_params = [{pipeline_mode = #tpu.pipeline_mode<synchronous>, transform_indices = @transform_0, window_bounds = array<i64: 2, 64>}, {pipeline_mode = #tpu.pipeline_mode<synchronous>, transform_indices = @transform_1, window_bounds = array<i64: 64, 512>}, {pipeline_mode = #tpu.pipeline_mode<synchronous>, transform_indices = @transform_2, window_bounds = array<i64: 1, 512>}, {pipeline_mode = #tpu.pipeline_mode<synchronous>, transform_indices = @transform_3, window_bounds = array<i64: 512, 64>}, {pipeline_mode = #tpu.pipeline_mode<synchronous>, transform_indices = @transform_4, window_bounds = array<i64: 1, 64>}, {transform_indices = @transform_5, window_bounds = array<i64: 1, 2, 64>}]} {
    %c0_i32 = arith.constant 0 : i32
    %0 = arith.cmpi eq, %arg0, %c0_i32 : i32
    %1 = arith.extui %0 : i1 to i32
    %c0_i32_0 = arith.constant 0 : i32
    %2 = arith.cmpi ne, %1, %c0_i32_0 : i32
    scf.if %2 {
      %c0_55 = arith.constant 0 : index
      %c0_56 = arith.constant 0 : index
      %73 = vector.load %arg1[%c0_55, %c0_56] : memref<2x64xf32, #tpu.memory_space<vmem>>, vector<2x64xf32>
      %c0_57 = arith.constant 0 : index
      %c0_58 = arith.constant 0 : index
      %74 = vector.load %arg7[%c0_57, %c0_58] : memref<2x64xf32, #tpu.memory_space<vmem>>, vector<2x64xf32>
      tpu.vector_store %arg7[%c0_57, %c0_58], %73 {strides = array<i32>} : memref<2x64xf32, #tpu.memory_space<vmem>>, vector<2x64xf32>,
    } else {
    }
    %c0 = arith.constant 0 : index
    %c0_1 = arith.constant 0 : index
    %3 = vector.load %arg7[%c0, %c0_1] : memref<2x64xf32, #tpu.memory_space<vmem>>, vector<2x64xf32>
    %c0_2 = arith.constant 0 : index
    %c0_3 = arith.constant 0 : index
    %4 = vector.load %arg2[%c0_2, %c0_3] : memref<64x512xf32, #tpu.memory_space<vmem>>, vector<64x512xf32>
    %cst = arith.constant dense<0.000000e+00> : vector<2x512xf32>
    %5 = tpu.matmul %3, %4, %cst {dimension_numbers = #tpu.dot_dimension_numbers<[1], [0], [0], [1], [0, 0, 1, 1], [], []>} : vector<2x64xf32>, vector<64x512xf32>, vector<2x512xf32> -> vector<2x512xf32>
    %c0_4 = arith.constant 0 : index
    %c0_5 = arith.constant 0 : index
    %6 = vector.load %arg3[%c0_4, %c0_5] : memref<1x512xf32, #tpu.memory_space<vmem>>, vector<1x512xf32>
    %7 = vector.broadcast %6 : vector<1x512xf32> to vector<2x512xf32>
    %8 = arith.addf %5, %7 : vector<2x512xf32>
    %cst_6 = arith.constant 0.000000e+00 : f32
    %9 = vector.broadcast %cst_6 : f32 to vector<2x512xf32>
    %10 = arith.maximumf %8, %9 : vector<2x512xf32>
    %c0_7 = arith.constant 0 : index
    %c0_8 = arith.constant 0 : index
    %11 = vector.load %arg4[%c0_7, %c0_8] : memref<512x64xf32, #tpu.memory_space<vmem>>, vector<512x64xf32>
    %cst_9 = arith.constant dense<0.000000e+00> : vector<2x64xf32>
    %12 = tpu.matmul %10, %11, %cst_9 {dimension_numbers = #tpu.dot_dimension_numbers<[1], [0], [0], [1], [0, 0, 1, 1], [], []>} : vector<2x512xf32>, vector<512x64xf32>, vector<2x64xf32> -> vector<2x64xf32>
    %c0_10 = arith.constant 0 : index
    %c0_11 = arith.constant 0 : index
    %13 = vector.load %arg5[%c0_10, %c0_11] : memref<1x64xf32, #tpu.memory_space<vmem>>, vector<1x64xf32>
    %14 = vector.broadcast %13 : vector<1x64xf32> to vector<2x64xf32>
    %15 = arith.addf %12, %14 : vector<2x64xf32>
    %cst_12 = arith.constant 2.500000e-02 : f32
    %16 = vector.broadcast %cst_12 : f32 to vector<2x64xf32>
    %17 = arith.mulf %16, %15 : vector<2x64xf32>
    %18 = arith.addf %3, %17 : vector<2x64xf32>
    %c0_13 = arith.constant 0 : index
    %c0_14 = arith.constant 0 : index
    %19 = vector.load %arg2[%c0_13, %c0_14] : memref<64x512xf32, #tpu.memory_space<vmem>>, vector<64x512xf32>
    %cst_15 = arith.constant dense<0.000000e+00> : vector<2x512xf32>
    %20 = tpu.matmul %18, %19, %cst_15 {dimension_numbers = #tpu.dot_dimension_numbers<[1], [0], [0], [1], [0, 0, 1, 1], [], []>} : vector<2x64xf32>, vector<64x512xf32>, vector<2x512xf32> -> vector<2x512xf32>
    %c0_16 = arith.constant 0 : index
    %c0_17 = arith.constant 0 : index
    %21 = vector.load %arg3[%c0_16, %c0_17] : memref<1x512xf32, #tpu.memory_space<vmem>>, vector<1x512xf32>
    %22 = vector.broadcast %21 : vector<1x512xf32> to vector<2x512xf32>
    %23 = arith.addf %20, %22 : vector<2x512xf32>
    %cst_18 = arith.constant 0.000000e+00 : f32
    %24 = vector.broadcast %cst_18 : f32 to vector<2x512xf32>
    %25 = arith.maximumf %23, %24 : vector<2x512xf32>
    %c0_19 = arith.constant 0 : index
    %c0_20 = arith.constant 0 : index
    %26 = vector.load %arg4[%c0_19, %c0_20] : memref<512x64xf32, #tpu.memory_space<vmem>>, vector<512x64xf32>
    %cst_21 = arith.constant dense<0.000000e+00> : vector<2x64xf32>
    %27 = tpu.matmul %25, %26, %cst_21 {dimension_numbers = #tpu.dot_dimension_numbers<[1], [0], [0], [1], [0, 0, 1, 1], [], []>} : vector<2x512xf32>, vector<512x64xf32>, vector<2x64xf32> -> vector<2x64xf32>
    %c0_22 = arith.constant 0 : index
    %c0_23 = arith.constant 0 : index
    %28 = vector.load %arg5[%c0_22, %c0_23] : memref<1x64xf32, #tpu.memory_space<vmem>>, vector<1x64xf32>
    %29 = vector.broadcast %28 : vector<1x64xf32> to vector<2x64xf32>
    %30 = arith.addf %27, %29 : vector<2x64xf32>
    %cst_24 = arith.constant 2.500000e-02 : f32
    %31 = vector.broadcast %cst_24 : f32 to vector<2x64xf32>
    %32 = arith.mulf %31, %30 : vector<2x64xf32>
    %33 = arith.addf %3, %32 : vector<2x64xf32>
    %c0_25 = arith.constant 0 : index
    %c0_26 = arith.constant 0 : index
    %34 = vector.load %arg2[%c0_25, %c0_26] : memref<64x512xf32, #tpu.memory_space<vmem>>, vector<64x512xf32>
    %cst_27 = arith.constant dense<0.000000e+00> : vector<2x512xf32>
    %35 = tpu.matmul %33, %34, %cst_27 {dimension_numbers = #tpu.dot_dimension_numbers<[1], [0], [0], [1], [0, 0, 1, 1], [], []>} : vector<2x64xf32>, vector<64x512xf32>, vector<2x512xf32> -> vector<2x512xf32>
    %c0_28 = arith.constant 0 : index
    %c0_29 = arith.constant 0 : index
    %36 = vector.load %arg3[%c0_28, %c0_29] : memref<1x512xf32, #tpu.memory_space<vmem>>, vector<1x512xf32>
    %37 = vector.broadcast %36 : vector<1x512xf32> to vector<2x512xf32>
    %38 = arith.addf %35, %37 : vector<2x512xf32>
    %cst_30 = arith.constant 0.000000e+00 : f32
    %39 = vector.broadcast %cst_30 : f32 to vector<2x512xf32>
    %40 = arith.maximumf %38, %39 : vector<2x512xf32>
    %c0_31 = arith.constant 0 : index
    %c0_32 = arith.constant 0 : index
    %41 = vector.load %arg4[%c0_31, %c0_32] : memref<512x64xf32, #tpu.memory_space<vmem>>, vector<512x64xf32>
    %cst_33 = arith.constant dense<0.000000e+00> : vector<2x64xf32>
    %42 = tpu.matmul %40, %41, %cst_33 {dimension_numbers = #tpu.dot_dimension_numbers<[1], [0], [0], [1], [0, 0, 1, 1], [], []>} : vector<2x512xf32>, vector<512x64xf32>, vector<2x64xf32> -> vector<2x64xf32>
    %c0_34 = arith.constant 0 : index
    %c0_35 = arith.constant 0 : index
    %43 = vector.load %arg5[%c0_34, %c0_35] : memref<1x64xf32, #tpu.memory_space<vmem>>, vector<1x64xf32>
    %44 = vector.broadcast %43 : vector<1x64xf32> to vector<2x64xf32>
    %45 = arith.addf %42, %44 : vector<2x64xf32>
    %cst_36 = arith.constant 5.000000e-02 : f32
    %46 = vector.broadcast %cst_36 : f32 to vector<2x64xf32>
    %47 = arith.mulf %46, %45 : vector<2x64xf32>
    %48 = arith.addf %3, %47 : vector<2x64xf32>
    %c0_37 = arith.constant 0 : index
    %c0_38 = arith.constant 0 : index
    %49 = vector.load %arg2[%c0_37, %c0_38] : memref<64x512xf32, #tpu.memory_space<vmem>>, vector<64x512xf32>
    %cst_39 = arith.constant dense<0.000000e+00> : vector<2x512xf32>
    %50 = tpu.matmul %48, %49, %cst_39 {dimension_numbers = #tpu.dot_dimension_numbers<[1], [0], [0], [1], [0, 0, 1, 1], [], []>} : vector<2x64xf32>, vector<64x512xf32>, vector<2x512xf32> -> vector<2x512xf32>
    %c0_40 = arith.constant 0 : index
    %c0_41 = arith.constant 0 : index
    %51 = vector.load %arg3[%c0_40, %c0_41] : memref<1x512xf32, #tpu.memory_space<vmem>>, vector<1x512xf32>
    %52 = vector.broadcast %51 : vector<1x512xf32> to vector<2x512xf32>
    %53 = arith.addf %50, %52 : vector<2x512xf32>
    %cst_42 = arith.constant 0.000000e+00 : f32
    %54 = vector.broadcast %cst_42 : f32 to vector<2x512xf32>
    %55 = arith.maximumf %53, %54 : vector<2x512xf32>
    %c0_43 = arith.constant 0 : index
    %c0_44 = arith.constant 0 : index
    %56 = vector.load %arg4[%c0_43, %c0_44] : memref<512x64xf32, #tpu.memory_space<vmem>>, vector<512x64xf32>
    %cst_45 = arith.constant dense<0.000000e+00> : vector<2x64xf32>
    %57 = tpu.matmul %55, %56, %cst_45 {dimension_numbers = #tpu.dot_dimension_numbers<[1], [0], [0], [1], [0, 0, 1, 1], [], []>} : vector<2x512xf32>, vector<512x64xf32>, vector<2x64xf32> -> vector<2x64xf32>
    %c0_46 = arith.constant 0 : index
    %c0_47 = arith.constant 0 : index
    %58 = vector.load %arg5[%c0_46, %c0_47] : memref<1x64xf32, #tpu.memory_space<vmem>>, vector<1x64xf32>
    %59 = vector.broadcast %58 : vector<1x64xf32> to vector<2x64xf32>
    %60 = arith.addf %57, %59 : vector<2x64xf32>
    %61 = arith.addf %30, %45 : vector<2x64xf32>
    %cst_48 = arith.constant 2.000000e+00 : f32
    %62 = vector.broadcast %cst_48 : f32 to vector<2x64xf32>
    %63 = arith.mulf %62, %61 : vector<2x64xf32>
    %64 = arith.addf %15, %63 : vector<2x64xf32>
    %65 = arith.addf %64, %60 : vector<2x64xf32>
    %cst_49 = arith.constant 0.00833333377 : f32
    %66 = vector.broadcast %cst_49 : f32 to vector<2x64xf32>
    %67 = arith.mulf %66, %65 : vector<2x64xf32>
    %68 = arith.addf %3, %67 : vector<2x64xf32>
    %c0_50 = arith.constant 0 : index
    %c0_51 = arith.constant 0 : index
    %69 = vector.load %arg7[%c0_50, %c0_51] : memref<2x64xf32, #tpu.memory_space<vmem>>, vector<2x64xf32>
    tpu.vector_store %arg7[%c0_50, %c0_51], %68 {strides = array<i32>} : memref<2x64xf32, #tpu.memory_space<vmem>>, vector<2x64xf32>,
    %c0_52 = arith.constant 0 : index
    %c0_53 = arith.constant 0 : index
    %c0_54 = arith.constant 0 : index
    %70 = vector.load %arg6[%c0_52, %c0_53, %c0_54] : memref<1x2x64xf32, #tpu.memory_space<vmem>>, vector<1x2x64xf32>
    %71 = vector.shape_cast %70 : vector<1x2x64xf32> to vector<2x64xf32>
    %72 = vector.shape_cast %68 : vector<2x64xf32> to vector<1x2x64xf32>
    tpu.vector_store %arg6[%c0_52, %c0_53, %c0_54], %72 {strides = array<i32>} : memref<1x2x64xf32, #tpu.memory_space<vmem>>, vector<1x2x64xf32>,
    return
  }
  func.func @transform_0(%arg0: i32) -> (i32, i32) {
    %c0_i32 = arith.constant 0 : i32
    %c0_i32_0 = arith.constant 0 : i32
    %c0_i32_1 = arith.constant 0 : i32
    return %c0_i32, %c0_i32_0 : i32, i32
  }
  func.func @transform_1(%arg0: i32) -> (i32, i32) {
    %c0_i32 = arith.constant 0 : i32
    %c0_i32_0 = arith.constant 0 : i32
    %c0_i32_1 = arith.constant 0 : i32
    return %c0_i32, %c0_i32_0 : i32, i32
  }
  func.func @transform_2(%arg0: i32) -> (i32, i32) {
    %c0_i32 = arith.constant 0 : i32
    %c0_i32_0 = arith.constant 0 : i32
    %c0_i32_1 = arith.constant 0 : i32
    return %c0_i32, %c0_i32_0 : i32, i32
  }
  func.func @transform_3(%arg0: i32) -> (i32, i32) {
    %c0_i32 = arith.constant 0 : i32
    %c0_i32_0 = arith.constant 0 : i32
    %c0_i32_1 = arith.constant 0 : i32
    return %c0_i32, %c0_i32_0 : i32, i32
  }
  func.func @transform_4(%arg0: i32) -> (i32, i32) {
    %c0_i32 = arith.constant 0 : i32
    %c0_i32_0 = arith.constant 0 : i32
    %c0_i32_1 = arith.constant 0 : i32
    return %c0_i32, %c0_i32_0 : i32, i32
  }
  func.func @transform_5(%arg0: i32) -> (i32, i32, i32) {
    %c0_i32 = arith.constant 0 : i32
    %c0_i32_0 = arith.constant 0 : i32
    %c0_i32_1 = arith.constant 0 : i32
    return %arg0, %c0_i32, %c0_i32_0 : i32, i32, i32
  }
}

</mosaic_0001>

<llo_original>
// kernel: rk4_rollout.1
$region0: #{rk4_rollout.1}
  #allocation0 [shape = 'u32[]', space=smem, size = 0x4, offset = 0x4, fixed_abs, tag = 'smem constant byte address 0x4 - core index']
  #allocation1 [shape = 'u32[72,128]{1,0:T(1,128)}', space=vmem, size = 0x9000, scoped, tag = 'internal scratch']
  #allocation2 [shape = 'f32[2,64]{1,0:T(2,128)}', space=vmem, size = 0x400, scoped, tag = 'scratch operand']
  %s0 = inlined_call_operand.vmem [shape: f32[2,64], index: 0, kind: input, shape index: {}]
  %s1 = inlined_call_operand.vmem [shape: f32[64,512], index: 1, kind: input, shape index: {}]
  %s2 = inlined_call_operand.vmem [shape: f32[1,512], index: 2, kind: input, shape index: {}]
  %s3 = inlined_call_operand.vmem [shape: f32[512,64], index: 3, kind: input, shape index: {}]
  %s4 = inlined_call_operand.vmem [shape: f32[1,64], index: 4, kind: input, shape index: {}]
  %s5 = inlined_call_operand.vmem [shape: f32[1,2,64], index: 5, kind: output, shape index: {}]
  %s6 = sld [smem:[#allocation0]]
  $region34: #{rk4_rollout.1} parent=0
    _
  %s8 = ssub.s32 1, %s6
  %s9 = scalar_select 0, %s8, %s6
  // Predicated region
  $region2: #{rk4_rollout.1} parent=0 // pred_check
    _
  $region3: #{rk4_rollout.1} parent=0 // pred_check_branch
    %11 = sbr.rel (0) target = $region5
  $region4: #{rk4_rollout.1} parent=0 // pred_region
    _
  $region5: #{rk4_rollout.1} parent=0 // pred_fallthru
    _
  // Predicated region
  $region6: #{rk4_rollout.1} parent=0 // pred_check
    _
  $region7: #{rk4_rollout.1} parent=0 // pred_check_branch
    %13 = sbr.rel (0) target = $region9
  $region8: #{rk4_rollout.1} parent=0 // pred_region
    _
  $region9: #{rk4_rollout.1} parent=0 // pred_fallthru
    _
  // Predicated region
  $region10: #{rk4_rollout.1} parent=0 // pred_check
    _
  $region11: #{rk4_rollout.1} parent=0 // pred_check_branch
    %15 = sbr.rel (0) target = $region13
  $region12: #{rk4_rollout.1} parent=0 // pred_region
    _
  $region13: #{rk4_rollout.1} parent=0 // pred_fallthru
    _
  // Predicated region
  $region14: #{rk4_rollout.1} parent=0 // pred_check
    _
  $region15: #{rk4_rollout.1} parent=0 // pred_check_branch
    %17 = sbr.rel (0) target = $region17
  $region16: #{rk4_rollout.1} parent=0 // pred_region
    _
  $region17: #{rk4_rollout.1} parent=0 // pred_fallthru
    _
  // Predicated region
  $region18: #{rk4_rollout.1} parent=0 // pred_check
    _
  $region19: #{rk4_rollout.1} parent=0 // pred_check_branch
    %19 = sbr.rel (0) target = $region21
  $region20: #{rk4_rollout.1} parent=0 // pred_region
    _
  $region21: #{rk4_rollout.1} parent=0 // pred_fallthru
    _
  %p20 = scmp.eq.s32.totalorder 0, 0
  // Predicated region
  $region22: #{rk4_rollout.1} parent=0 // pred_check
    %p21 = pneg %p20
  $region23: #{rk4_rollout.1} parent=0 // pred_check_branch
    %23 = sbr.rel (%p21) target = $region25
  $region24: #{rk4_rollout.1} parent=0 // pred_region
    %v24 = vld [vmem:[%s0] sm:$0x3]
    %vm25 = vcmask 517120
    %26 = vst.msk [vmem:[#allocation2] sm:$0x3] %vm25, %v24
  $region25: #{rk4_rollout.1} parent=0 // pred_fallthru
    _
  %v27 = vld [vmem:[#allocation2] sm:$0x3]
  %v28 = vld [vmem:[%s1] sm:$0xff]
  %v29 = vld [vmem:[%s1 + $0x8] sm:$0xff]
  %v30 = vld [vmem:[%s1 + $0x10] sm:$0xff]
  %v31 = vld [vmem:[%s1 + $0x18] sm:$0xff]
  %v32 = vld [vmem:[%s1 + $0x20] sm:$0xff]
  %v33 = vld [vmem:[%s1 + $0x28] sm:$0xff]
  %v34 = vld [vmem:[%s1 + $0x30] sm:$0xff]
  %v35 = vld [vmem:[%s1 + $0x38] sm:$0xff]
  %v36 = vld [vmem:[%s1 + $0x40] sm:$0xff]
  %v37 = vld [vmem:[%s1 + $0x48] sm:$0xff]
  %v38 = vld [vmem:[%s1 + $0x50] sm:$0xff]
  %v39 = vld [vmem:[%s1 + $0x58] sm:$0xff]
  %v40 = vld [vmem:[%s1 + $0x60] sm:$0xff]
  %v41 = vld [vmem:[%s1 + $0x68] sm:$0xff]
  %v42 = vld [vmem:[%s1 + $0x70] sm:$0xff]
  %v43 = vld [vmem:[%s1 + $0x78] sm:$0xff]
  %v44 = vld [vmem:[%s1 + $0x80] sm:$0xff]
  %v45 = vld [vmem:[%s1 + $0x88] sm:$0xff]
  %v46 = vld [vmem:[%s1 + $0x90] sm:$0xff]
  %v47 = vld [vmem:[%s1 + $0x98] sm:$0xff]
  %v48 = vld [vmem:[%s1 + $0xa0] sm:$0xff]
  %v49 = vld [vmem:[%s1 + $0xa8] sm:$0xff]
  %v50 = vld [vmem:[%s1 + $0xb0] sm:$0xff]
  %v51 = vld [vmem:[%s1 + $0xb8] sm:$0xff]
  %v52 = vld [vmem:[%s1 + $0xc0] sm:$0xff]
  %v53 = vld [vmem:[%s1 + $0xc8] sm:$0xff]
  %v54 = vld [vmem:[%s1 + $0xd0] sm:$0xff]
  %v55 = vld [vmem:[%s1 + $0xd8] sm:$0xff]
  %v56 = vld [vmem:[%s1 + $0xe0] sm:$0xff]
  %v57 = vld [vmem:[%s1 + $0xe8] sm:$0xff]
  %v58 = vld [vmem:[%s1 + $0xf0] sm:$0xff]
  %v59 = vld [vmem:[%s1 + $0xf8] sm:$0xff]
  %v60 = vld [vmem:[%s2] sm:$0xf]
  %v62 = vperm.slane %v60, 0
  %v63 = vperm.slane %v60, 1
  %v64 = vperm.slane %v60, 2
  %v65 = vperm.slane %v60, 3
  %vm70 = vcmask 523264
  %v72 = vsel %vm70, %v27, 0
  %74 = vmatpush.msra.mxu0 0.0
  %75 = vmatpush.msra.mxu0 0.0
  %76 = vmatpush.msra.mxu0 0.0
  %77 = vmatpush.msra.mxu0 0.0
  %78 = vmatpush.msra.mxu0 0.0
  %79 = vmatpush.msra.mxu0 0.0
  %80 = vmatpush.msra.mxu0 0.0
  %81 = vmatpush.msra.mxu0 0.0
  %82 = vmatpush.msra.mxu0 %v56
  %83 = vmatpush.msra.mxu0 %v52
  %84 = vmatpush.msra.mxu0 %v48
  %85 = vmatpush.msra.mxu0 %v44
  %86 = vmatpush.msra.mxu0 %v40
  %87 = vmatpush.msra.mxu0 %v36
  %88 = vmatpush.msra.mxu0 %v32
  %89 = vmatpush.msra.mxu0 %v28
  %90 = vmatmul.f32.gmra.mxu0 %v72
  %v91 = vpop.f32.mrf.mxu0
  %v92 = vadd.f32 %v62, %v91
  %93 = vdwg.mxu0
  %94 = vmatpush.msra.mxu0 0.0
  %95 = vmatpush.msra.mxu0 0.0
  %96 = vmatpush.msra.mxu0 0.0
  %97 = vmatpush.msra.mxu0 0.0
  %98 = vmatpush.msra.mxu0 0.0
  %99 = vmatpush.msra.mxu0 0.0
  %100 = vmatpush.msra.mxu0 0.0
  %101 = vmatpush.msra.mxu0 0.0
  %102 = vmatpush.msra.mxu0 %v57
  %103 = vmatpush.msra.mxu0 %v53
  %104 = vmatpush.msra.mxu0 %v49
  %105 = vmatpush.msra.mxu0 %v45
  %106 = vmatpush.msra.mxu0 %v41
  %107 = vmatpush.msra.mxu0 %v37
  %108 = vmatpush.msra.mxu0 %v33
  %109 = vmatpush.msra.mxu0 %v29
  %110 = vmatmul.f32.gmra.mxu0 %v72
  %v111 = vpop.f32.mrf.mxu0
  %v112 = vadd.f32 %v63, %v111
  %113 = vdwg.mxu0
  %114 = vmatpush.msra.mxu0 0.0
  %115 = vmatpush.msra.mxu0 0.0
  %116 = vmatpush.msra.mxu0 0.0
  %117 = vmatpush.msra.mxu0 0.0
  %118 = vmatpush.msra.mxu0 0.0
  %119 = vmatpush.msra.mxu0 0.0
  %120 = vmatpush.msra.mxu0 0.0
  %121 = vmatpush.msra.mxu0 0.0
  %122 = vmatpush.msra.mxu0 %v58
  %123 = vmatpush.msra.mxu0 %v54
  %124 = vmatpush.msra.mxu0 %v50
  %125 = vmatpush.msra.mxu0 %v46
  %126 = vmatpush.msra.mxu0 %v42
  %127 = vmatpush.msra.mxu0 %v38
  %128 = vmatpush.msra.mxu0 %v34
  %129 = vmatpush.msra.mxu0 %v30
  %130 = vmatmul.f32.gmra.mxu0 %v72
  %v131 = vpop.f32.mrf.mxu0
  %v132 = vadd.f32 %v64, %v131
  %133 = vdwg.mxu0
  %134 = vmatpush.msra.mxu0 0.0
  %135 = vmatpush.msra.mxu0 0.0
  %136 = vmatpush.msra.mxu0 0.0
  %137 = vmatpush.msra.mxu0 0.0
  %138 = vmatpush.msra.mxu0 0.0
  %139 = vmatpush.msra.mxu0 0.0
  %140 = vmatpush.msra.mxu0 0.0
  %141 = vmatpush.msra.mxu0 0.0
  %142 = vmatpush.msra.mxu0 %v59
  %143 = vmatpush.msra.mxu0 %v55
  %144 = vmatpush.msra.mxu0 %v51
  %145 = vmatpush.msra.mxu0 %v47
  %146 = vmatpush.msra.mxu0 %v43
  %147 = vmatpush.msra.mxu0 %v39
  %148 = vmatpush.msra.mxu0 %v35
  %149 = vmatpush.msra.mxu0 %v31
  %150 = vmatmul.f32.gmra.mxu0 %v72
  %v151 = vpop.f32.mrf.mxu0
  %v152 = vadd.f32 %v65, %v151
  %153 = vdwg.mxu0
  %v154 = vmax.f32 %v92, 0.0
  %v155 = vmax.f32 %v112, 0.0
  %v156 = vmax.f32 %v132, 0.0
  %v157 = vmax.f32 %v152, 0.0
  %v158 = vld [vmem:[%s3] sm:$0xff]
  %v159 = vld [vmem:[%s3 + $0x8] sm:$0xff]
  %v160 = vld [vmem:[%s3 + $0x10] sm:$0xff]
  %v161 = vld [vmem:[%s3 + $0x18] sm:$0xff]
  %v162 = vld [vmem:[%s3 + $0x20] sm:$0xff]
  %v163 = vld [vmem:[%s3 + $0x28] sm:$0xff]
  %v164 = vld [vmem:[%s3 + $0x30] sm:$0xff]
  %v165 = vld [vmem:[%s3 + $0x38] sm:$0xff]
  %v166 = vld [vmem:[%s3 + $0x40] sm:$0xff]
  %v167 = vld [vmem:[%s3 + $0x48] sm:$0xff]
  %v168 = vld [vmem:[%s3 + $0x50] sm:$0xff]
  %v169 = vld [vmem:[%s3 + $0x58] sm:$0xff]
  %v170 = vld [vmem:[%s3 + $0x60] sm:$0xff]
  %v171 = vld [vmem:[%s3 + $0x68] sm:$0xff]
  %v172 = vld [vmem:[%s3 + $0x70] sm:$0xff]
  %v173 = vld [vmem:[%s3 + $0x78] sm:$0xff]
  %v174 = vld [vmem:[%s3 + $0x80] sm:$0xff]
  %v175 = vld [vmem:[%s3 + $0x88] sm:$0xff]
  %v176 = vld [vmem:[%s3 + $0x90] sm:$0xff]
  %v177 = vld [vmem:[%s3 + $0x98] sm:$0xff]
  %v178 = vld [vmem:[%s3 + $0xa0] sm:$0xff]
  %v179 = vld [vmem:[%s3 + $0xa8] sm:$0xff]
  %v180 = vld [vmem:[%s3 + $0xb0] sm:$0xff]
  %v181 = vld [vmem:[%s3 + $0xb8] sm:$0xff]
  %v182 = vld [vmem:[%s3 + $0xc0] sm:$0xff]
  %v183 = vld [vmem:[%s3 + $0xc8] sm:$0xff]
  %v184 = vld [vmem:[%s3 + $0xd0] sm:$0xff]
  %v185 = vld [vmem:[%s3 + $0xd8] sm:$0xff]
  %v186 = vld [vmem:[%s3 + $0xe0] sm:$0xff]
  %v187 = vld [vmem:[%s3 + $0xe8] sm:$0xff]
  %v188 = vld [vmem:[%s3 + $0xf0] sm:$0xff]
  %v189 = vld [vmem:[%s3 + $0xf8] sm:$0xff]
  %v190 = vld [vmem:[%s3 + $0x100] sm:$0xff]
  %v191 = vld [vmem:[%s3 + $0x108] sm:$0xff]
  %v192 = vld [vmem:[%s3 + $0x110] sm:$0xff]
  %v193 = vld [vmem:[%s3 + $0x118] sm:$0xff]
  %v194 = vld [vmem:[%s3 + $0x120] sm:$0xff]
  %v195 = vld [vmem:[%s3 + $0x128] sm:$0xff]
  %v196 = vld [vmem:[%s3 + $0x130] sm:$0xff]
  %v197 = vld [vmem:[%s3 + $0x138] sm:$0xff]
  %v198 = vld [vmem:[%s3 + $0x140] sm:$0xff]
  %v199 = vld [vmem:[%s3 + $0x148] sm:$0xff]
  %v200 = vld [vmem:[%s3 + $0x150] sm:$0xff]
  %v201 = vld [vmem:[%s3 + $0x158] sm:$0xff]
  %v202 = vld [vmem:[%s3 + $0x160] sm:$0xff]
  %v203 = vld [vmem:[%s3 + $0x168] sm:$0xff]
  %v204 = vld [vmem:[%s3 + $0x170] sm:$0xff]
  %v205 = vld [vmem:[%s3 + $0x178] sm:$0xff]
  %v206 = vld [vmem:[%s3 + $0x180] sm:$0xff]
  %v207 = vld [vmem:[%s3 + $0x188] sm:$0xff]
  %v208 = vld [vmem:[%s3 + $0x190] sm:$0xff]
  %v209 = vld [vmem:[%s3 + $0x198] sm:$0xff]
  %v210 = vld [vmem:[%s3 + $0x1a0] sm:$0xff]
  %v211 = vld [vmem:[%s3 + $0x1a8] sm:$0xff]
  %v212 = vld [vmem:[%s3 + $0x1b0] sm:$0xff]
  %v213 = vld [vmem:[%s3 + $0x1b8] sm:$0xff]
  %v214 = vld [vmem:[%s3 + $0x1c0] sm:$0xff]
  %v215 = vld [vmem:[%s3 + $0x1c8] sm:$0xff]
  %v216 = vld [vmem:[%s3 + $0x1d0] sm:$0xff]
  %v217 = vld [vmem:[%s3 + $0x1d8] sm:$0xff]
  %v218 = vld [vmem:[%s3 + $0x1e0] sm:$0xff]
  %v219 = vld [vmem:[%s3 + $0x1e8] sm:$0xff]
  %v220 = vld [vmem:[%s3 + $0x1f0] sm:$0xff]
  %v221 = vld [vmem:[%s3 + $0x1f8] sm:$0xff]
  %v222 = vld [vmem:[%s4] sm:$0x1]
  %v224 = vperm.slane %v222, 0
  %226 = vmatpush.msra.mxu0 %v173
  %227 = vmatpush.msra.mxu0 %v172
  %228 = vmatpush.msra.mxu0 %v171
  %229 = vmatpush.msra.mxu0 %v170
  %230 = vmatpush.msra.mxu0 %v169
  %231 = vmatpush.msra.mxu0 %v168
  %232 = vmatpush.msra.mxu0 %v167
  %233 = vmatpush.msra.mxu0 %v166
  %234 = vmatpush.msra.mxu0 %v165
  %235 = vmatpush.msra.mxu0 %v164
  %236 = vmatpush.msra.mxu0 %v163
  %237 = vmatpush.msra.mxu0 %v162
  %238 = vmatpush.msra.mxu0 %v161
  %239 = vmatpush.msra.mxu0 %v160
  %240 = vmatpush.msra.mxu0 %v159
  %241 = vmatpush.msra.mxu0 %v158
  %242 = vmatmul.f32.gmra.mxu0 %v154
  %v243 = vpop.f32.mrf.mxu0
  %v244 = vadd.f32 %v224, %v243
  %245 = vdwg.mxu0
  %246 = vmatpush.msra.mxu0 %v189
  %247 = vmatpush.msra.mxu0 %v188
  %248 = vmatpush.msra.mxu0 %v187
  %249 = vmatpush.msra.mxu0 %v186
  %250 = vmatpush.msra.mxu0 %v185
  %251 = vmatpush.msra.mxu0 %v184
  %252 = vmatpush.msra.mxu0 %v183
  %253 = vmatpush.msra.mxu0 %v182
  %254 = vmatpush.msra.mxu0 %v181
  %255 = vmatpush.msra.mxu0 %v180
  %256 = vmatpush.msra.mxu0 %v179
  %257 = vmatpush.msra.mxu0 %v178
  %258 = vmatpush.msra.mxu0 %v177
  %259 = vmatpush.msra.mxu0 %v176
  %260 = vmatpush.msra.mxu0 %v175
  %261 = vmatpush.msra.mxu0 %v174
  %262 = vmatmul.f32.gmra.mxu0 %v155
  %v263 = vpop.f32.mrf.mxu0
  %v264 = vadd.f32 %v244, %v263
  %265 = vdwg.mxu0
  %266 = vmatpush.msra.mxu0 %v205
  %267 = vmatpush.msra.mxu0 %v204
  %268 = vmatpush.msra.mxu0 %v203
  %269 = vmatpush.msra.mxu0 %v202
  %270 = vmatpush.msra.mxu0 %v201
  %271 = vmatpush.msra.mxu0 %v200
  %272 = vmatpush.msra.mxu0 %v199
  %273 = vmatpush.msra.mxu0 %v198
  %274 = vmatpush.msra.mxu0 %v197
  %275 = vmatpush.msra.mxu0 %v196
  %276 = vmatpush.msra.mxu0 %v195
  %277 = vmatpush.msra.mxu0 %v194
  %278 = vmatpush.msra.mxu0 %v193
  %279 = vmatpush.msra.mxu0 %v192
  %280 = vmatpush.msra.mxu0 %v191
  %281 = vmatpush.msra.mxu0 %v190
  %282 = vmatmul.f32.gmra.mxu0 %v156
  %v283 = vpop.f32.mrf.mxu0
  %v284 = vadd.f32 %v264, %v283
  %285 = vdwg.mxu0
  %286 = vmatpush.msra.mxu0 %v221
  %287 = vmatpush.msra.mxu0 %v220
  %288 = vmatpush.msra.mxu0 %v219
  %289 = vmatpush.msra.mxu0 %v218
  %290 = vmatpush.msra.mxu0 %v217
  %291 = vmatpush.msra.mxu0 %v216
  %292 = vmatpush.msra.mxu0 %v215
  %293 = vmatpush.msra.mxu0 %v214
  %294 = vmatpush.msra.mxu0 %v213
  %295 = vmatpush.msra.mxu0 %v212
  %296 = vmatpush.msra.mxu0 %v211
  %297 = vmatpush.msra.mxu0 %v210
  %298 = vmatpush.msra.mxu0 %v209
  %299 = vmatpush.msra.mxu0 %v208
  %300 = vmatpush.msra.mxu0 %v207
  %301 = vmatpush.msra.mxu0 %v206
  %302 = vmatmul.f32.gmra.mxu0 %v157
  %v303 = vpop.f32.mrf.mxu0
  %v304 = vadd.f32 %v284, %v303
  %305 = vdwg.mxu0
  %v306 = vmul.f32 %v304, 0.025
  %v307 = vadd.f32 %v27, %v306
  %v309 = vsel %vm70, %v307, 0
  %311 = vmatpush.msra.mxu0 0.0
  %312 = vmatpush.msra.mxu0 0.0
  %313 = vmatpush.msra.mxu0 0.0
  %314 = vmatpush.msra.mxu0 0.0
  %315 = vmatpush.msra.mxu0 0.0
  %316 = vmatpush.msra.mxu0 0.0
  %317 = vmatpush.msra.mxu0 0.0
  %318 = vmatpush.msra.mxu0 0.0
  %319 = vmatpush.msra.mxu0 %v56
  %320 = vmatpush.msra.mxu0 %v52
  %321 = vmatpush.msra.mxu0 %v48
  %322 = vmatpush.msra.mxu0 %v44
  %323 = vmatpush.msra.mxu0 %v40
  %324 = vmatpush.msra.mxu0 %v36
  %325 = vmatpush.msra.mxu0 %v32
  %326 = vmatpush.msra.mxu0 %v28
  %327 = vmatmul.f32.gmra.mxu0 %v309
  %v328 = vpop.f32.mrf.mxu0
  %v329 = vadd.f32 %v62, %v328
  %330 = vdwg.mxu0
  %331 = vmatpush.msra.mxu0 0.0
  %332 = vmatpush.msra.mxu0 0.0
  %333 = vmatpush.msra.mxu0 0.0
  %334 = vmatpush.msra.mxu0 0.0
  %335 = vmatpush.msra.mxu0 0.0
  %336 = vmatpush.msra.mxu0 0.0
  %337 = vmatpush.msra.mxu0 0.0
  %338 = vmatpush.msra.mxu0 0.0
  %339 = vmatpush.msra.mxu0 %v57
  %340 = vmatpush.msra.mxu0 %v53
  %341 = vmatpush.msra.mxu0 %v49
  %342 = vmatpush.msra.mxu0 %v45
  %343 = vmatpush.msra.mxu0 %v41
  %344 = vmatpush.msra.mxu0 %v37
  %345 = vmatpush.msra.mxu0 %v33
  %346 = vmatpush.msra.mxu0 %v29
  %347 = vmatmul.f32.gmra.mxu0 %v309
  %v348 = vpop.f32.mrf.mxu0
  %v349 = vadd.f32 %v63, %v348
  %350 = vdwg.mxu0
  %351 = vmatpush.msra.mxu0 0.0
  %352 = vmatpush.msra.mxu0 0.0
  %353 = vmatpush.msra.mxu0 0.0
  %354 = vmatpush.msra.mxu0 0.0
  %355 = vmatpush.msra.mxu0 0.0
  %356 = vmatpush.msra.mxu0 0.0
  %357 = vmatpush.msra.mxu0 0.0
  %358 = vmatpush.msra.mxu0 0.0
  %359 = vmatpush.msra.mxu0 %v58
  %360 = vmatpush.msra.mxu0 %v54
  %361 = vmatpush.msra.mxu0 %v50
  %362 = vmatpush.msra.mxu0 %v46
  %363 = vmatpush.msra.mxu0 %v42
  %364 = vmatpush.msra.mxu0 %v38
  %365 = vmatpush.msra.mxu0 %v34
  %366 = vmatpush.msra.mxu0 %v30
  %367 = vmatmul.f32.gmra.mxu0 %v309
  %v368 = vpop.f32.mrf.mxu0
  %v369 = vadd.f32 %v64, %v368
  %370 = vdwg.mxu0
  %371 = vmatpush.msra.mxu0 0.0
  %372 = vmatpush.msra.mxu0 0.0
  %373 = vmatpush.msra.mxu0 0.0
  %374 = vmatpush.msra.mxu0 0.0
  %375 = vmatpush.msra.mxu0 0.0
  %376 = vmatpush.msra.mxu0 0.0
  %377 = vmatpush.msra.mxu0 0.0
  %378 = vmatpush.msra.mxu0 0.0
  %379 = vmatpush.msra.mxu0 %v59
  %380 = vmatpush.msra.mxu0 %v55
  %381 = vmatpush.msra.mxu0 %v51
  %382 = vmatpush.msra.mxu0 %v47
  %383 = vmatpush.msra.mxu0 %v43
  %384 = vmatpush.msra.mxu0 %v39
  %385 = vmatpush.msra.mxu0 %v35
  %386 = vmatpush.msra.mxu0 %v31
  %387 = vmatmul.f32.gmra.mxu0 %v309
  %v388 = vpop.f32.mrf.mxu0
  %v389 = vadd.f32 %v65, %v388
  %390 = vdwg.mxu0
  %v391 = vmax.f32 %v329, 0.0
  %v392 = vmax.f32 %v349, 0.0
  %v393 = vmax.f32 %v369, 0.0
  %v394 = vmax.f32 %v389, 0.0
  %395 = vmatpush.msra.mxu0 %v173
  %396 = vmatpush.msra.mxu0 %v172
  %397 = vmatpush.msra.mxu0 %v171
  %398 = vmatpush.msra.mxu0 %v170
  %399 = vmatpush.msra.mxu0 %v169
  %400 = vmatpush.msra.mxu0 %v168
  %401 = vmatpush.msra.mxu0 %v167
  %402 = vmatpush.msra.mxu0 %v166
  %403 = vmatpush.msra.mxu0 %v165
  %404 = vmatpush.msra.mxu0 %v164
  %405 = vmatpush.msra.mxu0 %v163
  %406 = vmatpush.msra.mxu0 %v162
  %407 = vmatpush.msra.mxu0 %v161
  %408 = vmatpush.msra.mxu0 %v160
  %409 = vmatpush.msra.mxu0 %v159
  %410 = vmatpush.msra.mxu0 %v158
  %411 = vmatmul.f32.gmra.mxu0 %v391
  %v412 = vpop.f32.mrf.mxu0
  %v413 = vadd.f32 %v224, %v412
  %414 = vdwg.mxu0
  %415 = vmatpush.msra.mxu0 %v189
  %416 = vmatpush.msra.mxu0 %v188
  %417 = vmatpush.msra.mxu0 %v187
  %418 = vmatpush.msra.mxu0 %v186
  %419 = vmatpush.msra.mxu0 %v185
  %420 = vmatpush.msra.mxu0 %v184
  %421 = vmatpush.msra.mxu0 %v183
  %422 = vmatpush.msra.mxu0 %v182
  %423 = vmatpush.msra.mxu0 %v181
  %424 = vmatpush.msra.mxu0 %v180
  %425 = vmatpush.msra.mxu0 %v179
  %426 = vmatpush.msra.mxu0 %v178
  %427 = vmatpush.msra.mxu0 %v177
  %428 = vmatpush.msra.mxu0 %v176
  %429 = vmatpush.msra.mxu0 %v175
  %430 = vmatpush.msra.mxu0 %v174
  %431 = vmatmul.f32.gmra.mxu0 %v392
  %v432 = vpop.f32.mrf.mxu0
  %v433 = vadd.f32 %v413, %v432
  %434 = vdwg.mxu0
  %435 = vmatpush.msra.mxu0 %v205
  %436 = vmatpush.msra.mxu0 %v204
  %437 = vmatpush.msra.mxu0 %v203
  %438 = vmatpush.msra.mxu0 %v202
  %439 = vmatpush.msra.mxu0 %v201
  %440 = vmatpush.msra.mxu0 %v200
  %441 = vmatpush.msra.mxu0 %v199
  %442 = vmatpush.msra.mxu0 %v198
  %443 = vmatpush.msra.mxu0 %v197
  %444 = vmatpush.msra.mxu0 %v196
  %445 = vmatpush.msra.mxu0 %v195
  %446 = vmatpush.msra.mxu0 %v194
  %447 = vmatpush.msra.mxu0 %v193
  %448 = vmatpush.msra.mxu0 %v192
  %449 = vmatpush.msra.mxu0 %v191
  %450 = vmatpush.msra.mxu0 %v190
  %451 = vmatmul.f32.gmra.mxu0 %v393
  %v452 = vpop.f32.mrf.mxu0
  %v453 = vadd.f32 %v433, %v452
  %454 = vdwg.mxu0
  %455 = vmatpush.msra.mxu0 %v221
  %456 = vmatpush.msra.mxu0 %v220
  %457 = vmatpush.msra.mxu0 %v219
  %458 = vmatpush.msra.mxu0 %v218
  %459 = vmatpush.msra.mxu0 %v217
  %460 = vmatpush.msra.mxu0 %v216
  %461 = vmatpush.msra.mxu0 %v215
  %462 = vmatpush.msra.mxu0 %v214
  %463 = vmatpush.msra.mxu0 %v213
  %464 = vmatpush.msra.mxu0 %v212
  %465 = vmatpush.msra.mxu0 %v211
  %466 = vmatpush.msra.mxu0 %v210
  %467 = vmatpush.msra.mxu0 %v209
  %468 = vmatpush.msra.mxu0 %v208
  %469 = vmatpush.msra.mxu0 %v207
  %470 = vmatpush.msra.mxu0 %v206
  %471 = vmatmul.f32.gmra.mxu0 %v394
  %v472 = vpop.f32.mrf.mxu0
  %v473 = vadd.f32 %v453, %v472
  %474 = vdwg.mxu0
  %v475 = vmul.f32 %v473, 0.025
  %v476 = vadd.f32 %v27, %v475
  %v478 = vsel %vm70, %v476, 0
  %480 = vmatpush.msra.mxu0 0.0
  %481 = vmatpush.msra.mxu0 0.0
  %482 = vmatpush.msra.mxu0 0.0
  %483 = vmatpush.msra.mxu0 0.0
  %484 = vmatpush.msra.mxu0 0.0
  %485 = vmatpush.msra.mxu0 0.0
  %486 = vmatpush.msra.mxu0 0.0
  %487 = vmatpush.msra.mxu0 0.0
  %488 = vmatpush.msra.mxu0 %v56
  %489 = vmatpush.msra.mxu0 %v52
  %490 = vmatpush.msra.mxu0 %v48
  %491 = vmatpush.msra.mxu0 %v44
  %492 = vmatpush.msra.mxu0 %v40
  %493 = vmatpush.msra.mxu0 %v36
  %494 = vmatpush.msra.mxu0 %v32
  %495 = vmatpush.msra.mxu0 %v28
  %496 = vmatmul.f32.gmra.mxu0 %v478
  %v497 = vpop.f32.mrf.mxu0
  %v498 = vadd.f32 %v62, %v497
  %499 = vdwg.mxu0
  %500 = vmatpush.msra.mxu0 0.0
  %501 = vmatpush.msra.mxu0 0.0
  %502 = vmatpush.msra.mxu0 0.0
  %503 = vmatpush.msra.mxu0 0.0
  %504 = vmatpush.msra.mxu0 0.0
  %505 = vmatpush.msra.mxu0 0.0
  %506 = vmatpush.msra.mxu0 0.0
  %507 = vmatpush.msra.mxu0 0.0
  %508 = vmatpush.msra.mxu0 %v57
  %509 = vmatpush.msra.mxu0 %v53
  %510 = vmatpush.msra.mxu0 %v49
  %511 = vmatpush.msra.mxu0 %v45
  %512 = vmatpush.msra.mxu0 %v41
  %513 = vmatpush.msra.mxu0 %v37
  %514 = vmatpush.msra.mxu0 %v33
  %515 = vmatpush.msra.mxu0 %v29
  %516 = vmatmul.f32.gmra.mxu0 %v478
  %v517 = vpop.f32.mrf.mxu0
  %v518 = vadd.f32 %v63, %v517
  %519 = vdwg.mxu0
  %520 = vmatpush.msra.mxu0 0.0
  %521 = vmatpush.msra.mxu0 0.0
  %522 = vmatpush.msra.mxu0 0.0
  %523 = vmatpush.msra.mxu0 0.0
  %524 = vmatpush.msra.mxu0 0.0
  %525 = vmatpush.msra.mxu0 0.0
  %526 = vmatpush.msra.mxu0 0.0
  %527 = vmatpush.msra.mxu0 0.0
  %528 = vmatpush.msra.mxu0 %v58
  %529 = vmatpush.msra.mxu0 %v54
  %530 = vmatpush.msra.mxu0 %v50
  %531 = vmatpush.msra.mxu0 %v46
  %532 = vmatpush.msra.mxu0 %v42
  %533 = vmatpush.msra.mxu0 %v38
  %534 = vmatpush.msra.mxu0 %v34
  %535 = vmatpush.msra.mxu0 %v30
  %536 = vmatmul.f32.gmra.mxu0 %v478
  %v537 = vpop.f32.mrf.mxu0
  %v538 = vadd.f32 %v64, %v537
  %539 = vdwg.mxu0
  %540 = vmatpush.msra.mxu0 0.0
  %541 = vmatpush.msra.mxu0 0.0
  %542 = vmatpush.msra.mxu0 0.0
  %543 = vmatpush.msra.mxu0 0.0
  %544 = vmatpush.msra.mxu0 0.0
  %545 = vmatpush.msra.mxu0 0.0
  %546 = vmatpush.msra.mxu0 0.0
  %547 = vmatpush.msra.mxu0 0.0
  %548 = vmatpush.msra.mxu0 %v59
  %549 = vmatpush.msra.mxu0 %v55
  %550 = vmatpush.msra.mxu0 %v51
  %551 = vmatpush.msra.mxu0 %v47
  %552 = vmatpush.msra.mxu0 %v43
  %553 = vmatpush.msra.mxu0 %v39
  %554 = vmatpush.msra.mxu0 %v35
  %555 = vmatpush.msra.mxu0 %v31
  %556 = vmatmul.f32.gmra.mxu0 %v478
  %v557 = vpop.f32.mrf.mxu0
  %v558 = vadd.f32 %v65, %v557
  %559 = vdwg.mxu0
  %v560 = vmax.f32 %v498, 0.0
  %v561 = vmax.f32 %v518, 0.0
  %v562 = vmax.f32 %v538, 0.0
  %v563 = vmax.f32 %v558, 0.0
  %564 = vmatpush.msra.mxu0 %v173
  %565 = vmatpush.msra.mxu0 %v172
  %566 = vmatpush.msra.mxu0 %v171
  %567 = vmatpush.msra.mxu0 %v170
  %568 = vmatpush.msra.mxu0 %v169
  %569 = vmatpush.msra.mxu0 %v168
  %570 = vmatpush.msra.mxu0 %v167
  %571 = vmatpush.msra.mxu0 %v166
  %572 = vmatpush.msra.mxu0 %v165
  %573 = vmatpush.msra.mxu0 %v164
  %574 = vmatpush.msra.mxu0 %v163
  %575 = vmatpush.msra.mxu0 %v162
  %576 = vmatpush.msra.mxu0 %v161
  %577 = vmatpush.msra.mxu0 %v160
  %578 = vmatpush.msra.mxu0 %v159
  %579 = vmatpush.msra.mxu0 %v158
  %580 = vmatmul.f32.gmra.mxu0 %v560
  %v581 = vpop.f32.mrf.mxu0
  %v582 = vadd.f32 %v224, %v581
  %583 = vdwg.mxu0
  %584 = vmatpush.msra.mxu0 %v189
  %585 = vmatpush.msra.mxu0 %v188
  %586 = vmatpush.msra.mxu0 %v187
  %587 = vmatpush.msra.mxu0 %v186
  %588 = vmatpush.msra.mxu0 %v185
  %589 = vmatpush.msra.mxu0 %v184
  %590 = vmatpush.msra.mxu0 %v183
  %591 = vmatpush.msra.mxu0 %v182
  %592 = vmatpush.msra.mxu0 %v181
  %593 = vmatpush.msra.mxu0 %v180
  %594 = vmatpush.msra.mxu0 %v179
  %595 = vmatpush.msra.mxu0 %v178
  %596 = vmatpush.msra.mxu0 %v177
  %597 = vmatpush.msra.mxu0 %v176
  %598 = vmatpush.msra.mxu0 %v175
  %599 = vmatpush.msra.mxu0 %v174
  %600 = vmatmul.f32.gmra.mxu0 %v561
  %v601 = vpop.f32.mrf.mxu0
  %v602 = vadd.f32 %v582, %v601
  %603 = vdwg.mxu0
  %604 = vmatpush.msra.mxu0 %v205
  %605 = vmatpush.msra.mxu0 %v204
  %606 = vmatpush.msra.mxu0 %v203
  %607 = vmatpush.msra.mxu0 %v202
  %608 = vmatpush.msra.mxu0 %v201
  %609 = vmatpush.msra.mxu0 %v200
  %610 = vmatpush.msra.mxu0 %v199
  %611 = vmatpush.msra.mxu0 %v198
  %612 = vmatpush.msra.mxu0 %v197
  %613 = vmatpush.msra.mxu0 %v196
  %614 = vmatpush.msra.mxu0 %v195
  %615 = vmatpush.msra.mxu0 %v194
  %616 = vmatpush.msra.mxu0 %v193
  %617 = vmatpush.msra.mxu0 %v192
  %618 = vmatpush.msra.mxu0 %v191
  %619 = vmatpush.msra.mxu0 %v190
  %620 = vmatmul.f32.gmra.mxu0 %v562
  %v621 = vpop.f32.mrf.mxu0
  %v622 = vadd.f32 %v602, %v621
  %623 = vdwg.mxu0
  %624 = vmatpush.msra.mxu0 %v221
  %625 = vmatpush.msra.mxu0 %v220
  %626 = vmatpush.msra.mxu0 %v219
  %627 = vmatpush.msra.mxu0 %v218
  %628 = vmatpush.msra.mxu0 %v217
  %629 = vmatpush.msra.mxu0 %v216
  %630 = vmatpush.msra.mxu0 %v215
  %631 = vmatpush.msra.mxu0 %v214
  %632 = vmatpush.msra.mxu0 %v213
  %633 = vmatpush.msra.mxu0 %v212
  %634 = vmatpush.msra.mxu0 %v211
  %635 = vmatpush.msra.mxu0 %v210
  %636 = vmatpush.msra.mxu0 %v209
  %637 = vmatpush.msra.mxu0 %v208
  %638 = vmatpush.msra.mxu0 %v207
  %639 = vmatpush.msra.mxu0 %v206
  %640 = vmatmul.f32.gmra.mxu0 %v563
  %v641 = vpop.f32.mrf.mxu0
  %v642 = vadd.f32 %v622, %v641
  %643 = vdwg.mxu0
  %v644 = vmul.f32 %v642, 0.05
  %v645 = vadd.f32 %v27, %v644
  %v647 = vsel %vm70, %v645, 0
  %649 = vmatpush.msra.mxu0 0.0
  %650 = vmatpush.msra.mxu0 0.0
  %651 = vmatpush.msra.mxu0 0.0
  %652 = vmatpush.msra.mxu0 0.0
  %653 = vmatpush.msra.mxu0 0.0
  %654 = vmatpush.msra.mxu0 0.0
  %655 = vmatpush.msra.mxu0 0.0
  %656 = vmatpush.msra.mxu0 0.0
  %657 = vmatpush.msra.mxu0 %v56
  %658 = vmatpush.msra.mxu0 %v52
  %659 = vmatpush.msra.mxu0 %v48
  %660 = vmatpush.msra.mxu0 %v44
  %661 = vmatpush.msra.mxu0 %v40
  %662 = vmatpush.msra.mxu0 %v36
  %663 = vmatpush.msra.mxu0 %v32
  %664 = vmatpush.msra.mxu0 %v28
  %665 = vmatmul.f32.gmra.mxu0 %v647
  %v666 = vpop.f32.mrf.mxu0
  %v667 = vadd.f32 %v62, %v666
  %668 = vdwg.mxu0
  %669 = vmatpush.msra.mxu0 0.0
  %670 = vmatpush.msra.mxu0 0.0
  %671 = vmatpush.msra.mxu0 0.0
  %672 = vmatpush.msra.mxu0 0.0
  %673 = vmatpush.msra.mxu0 0.0
  %674 = vmatpush.msra.mxu0 0.0
  %675 = vmatpush.msra.mxu0 0.0
  %676 = vmatpush.msra.mxu0 0.0
  %677 = vmatpush.msra.mxu0 %v57
  %678 = vmatpush.msra.mxu0 %v53
  %679 = vmatpush.msra.mxu0 %v49
  %680 = vmatpush.msra.mxu0 %v45
  %681 = vmatpush.msra.mxu0 %v41
  %682 = vmatpush.msra.mxu0 %v37
  %683 = vmatpush.msra.mxu0 %v33
  %684 = vmatpush.msra.mxu0 %v29
  %685 = vmatmul.f32.gmra.mxu0 %v647
  %v686 = vpop.f32.mrf.mxu0
  %v687 = vadd.f32 %v63, %v686
  %688 = vdwg.mxu0
  %689 = vmatpush.msra.mxu0 0.0
  %690 = vmatpush.msra.mxu0 0.0
  %691 = vmatpush.msra.mxu0 0.0
  %692 = vmatpush.msra.mxu0 0.0
  %693 = vmatpush.msra.mxu0 0.0
  %694 = vmatpush.msra.mxu0 0.0
  %695 = vmatpush.msra.mxu0 0.0
  %696 = vmatpush.msra.mxu0 0.0
  %697 = vmatpush.msra.mxu0 %v58
  %698 = vmatpush.msra.mxu0 %v54
  %699 = vmatpush.msra.mxu0 %v50
  %700 = vmatpush.msra.mxu0 %v46
  %701 = vmatpush.msra.mxu0 %v42
  %702 = vmatpush.msra.mxu0 %v38
  %703 = vmatpush.msra.mxu0 %v34
  %704 = vmatpush.msra.mxu0 %v30
  %705 = vmatmul.f32.gmra.mxu0 %v647
  %v706 = vpop.f32.mrf.mxu0
  %v707 = vadd.f32 %v64, %v706
  %708 = vdwg.mxu0
  %709 = vmatpush.msra.mxu0 0.0
  %710 = vmatpush.msra.mxu0 0.0
  %711 = vmatpush.msra.mxu0 0.0
  %712 = vmatpush.msra.mxu0 0.0
  %713 = vmatpush.msra.mxu0 0.0
  %714 = vmatpush.msra.mxu0 0.0
  %715 = vmatpush.msra.mxu0 0.0
  %716 = vmatpush.msra.mxu0 0.0
  %717 = vmatpush.msra.mxu0 %v59
  %718 = vmatpush.msra.mxu0 %v55
  %719 = vmatpush.msra.mxu0 %v51
  %720 = vmatpush.msra.mxu0 %v47
  %721 = vmatpush.msra.mxu0 %v43
  %722 = vmatpush.msra.mxu0 %v39
  %723 = vmatpush.msra.mxu0 %v35
  %724 = vmatpush.msra.mxu0 %v31
  %725 = vmatmul.f32.gmra.mxu0 %v647
  %v726 = vpop.f32.mrf.mxu0
  %v727 = vadd.f32 %v65, %v726
  %728 = vdwg.mxu0
  %v729 = vmax.f32 %v667, 0.0
  %v730 = vmax.f32 %v687, 0.0
  %v731 = vmax.f32 %v707, 0.0
  %v732 = vmax.f32 %v727, 0.0
  %733 = vmatpush.msra.mxu0 %v173
  %734 = vmatpush.msra.mxu0 %v172
  %735 = vmatpush.msra.mxu0 %v171
  %736 = vmatpush.msra.mxu0 %v170
  %737 = vmatpush.msra.mxu0 %v169
  %738 = vmatpush.msra.mxu0 %v168
  %739 = vmatpush.msra.mxu0 %v167
  %740 = vmatpush.msra.mxu0 %v166
  %741 = vmatpush.msra.mxu0 %v165
  %742 = vmatpush.msra.mxu0 %v164
  %743 = vmatpush.msra.mxu0 %v163
  %744 = vmatpush.msra.mxu0 %v162
  %745 = vmatpush.msra.mxu0 %v161
  %746 = vmatpush.msra.mxu0 %v160
  %747 = vmatpush.msra.mxu0 %v159
  %748 = vmatpush.msra.mxu0 %v158
  %749 = vmatmul.f32.gmra.mxu0 %v729
  %v750 = vpop.f32.mrf.mxu0
  %v751 = vadd.f32 %v224, %v750
  %752 = vdwg.mxu0
  %753 = vmatpush.msra.mxu0 %v189
  %754 = vmatpush.msra.mxu0 %v188
  %755 = vmatpush.msra.mxu0 %v187
  %756 = vmatpush.msra.mxu0 %v186
  %757 = vmatpush.msra.mxu0 %v185
  %758 = vmatpush.msra.mxu0 %v184
  %759 = vmatpush.msra.mxu0 %v183
  %760 = vmatpush.msra.mxu0 %v182
  %761 = vmatpush.msra.mxu0 %v181
  %762 = vmatpush.msra.mxu0 %v180
  %763 = vmatpush.msra.mxu0 %v179
  %764 = vmatpush.msra.mxu0 %v178
  %765 = vmatpush.msra.mxu0 %v177
  %766 = vmatpush.msra.mxu0 %v176
  %767 = vmatpush.msra.mxu0 %v175
  %768 = vmatpush.msra.mxu0 %v174
  %769 = vmatmul.f32.gmra.mxu0 %v730
  %v770 = vpop.f32.mrf.mxu0
  %v771 = vadd.f32 %v751, %v770
  %772 = vdwg.mxu0
  %773 = vmatpush.msra.mxu0 %v205
  %774 = vmatpush.msra.mxu0 %v204
  %775 = vmatpush.msra.mxu0 %v203
  %776 = vmatpush.msra.mxu0 %v202
  %777 = vmatpush.msra.mxu0 %v201
  %778 = vmatpush.msra.mxu0 %v200
  %779 = vmatpush.msra.mxu0 %v199
  %780 = vmatpush.msra.mxu0 %v198
  %781 = vmatpush.msra.mxu0 %v197
  %782 = vmatpush.msra.mxu0 %v196
  %783 = vmatpush.msra.mxu0 %v195
  %784 = vmatpush.msra.mxu0 %v194
  %785 = vmatpush.msra.mxu0 %v193
  %786 = vmatpush.msra.mxu0 %v192
  %787 = vmatpush.msra.mxu0 %v191
  %788 = vmatpush.msra.mxu0 %v190
  %789 = vmatmul.f32.gmra.mxu0 %v731
  %v790 = vpop.f32.mrf.mxu0
  %v791 = vadd.f32 %v771, %v790
  %792 = vdwg.mxu0
  %793 = vmatpush.msra.mxu0 %v221
  %794 = vmatpush.msra.mxu0 %v220
  %795 = vmatpush.msra.mxu0 %v219
  %796 = vmatpush.msra.mxu0 %v218
  %797 = vmatpush.msra.mxu0 %v217
  %798 = vmatpush.msra.mxu0 %v216
  %799 = vmatpush.msra.mxu0 %v215
  %800 = vmatpush.msra.mxu0 %v214
  %801 = vmatpush.msra.mxu0 %v213
  %802 = vmatpush.msra.mxu0 %v212
  %803 = vmatpush.msra.mxu0 %v211
  %804 = vmatpush.msra.mxu0 %v210
  %805 = vmatpush.msra.mxu0 %v209
  %806 = vmatpush.msra.mxu0 %v208
  %807 = vmatpush.msra.mxu0 %v207
  %808 = vmatpush.msra.mxu0 %v206
  %809 = vmatmul.f32.gmra.mxu0 %v732
  %v810 = vpop.f32.mrf.mxu0
  %v811 = vadd.f32 %v791, %v810
  %812 = vdwg.mxu0
  %v813 = vadd.f32 %v473, %v642
  %v814 = vmul.f32 %v813, 2.0
  %v815 = vadd.f32 %v304, %v814
  %v816 = vadd.f32 %v815, %v811
  %v817 = vmul.f32 %v816, 0.008333334
  %v818 = vadd.f32 %v27, %v817
  %vm819 = vcmask 517120
  %820 = vst.msk [vmem:[#allocation2] sm:$0x3] %vm819, %v818
  %821 = vst.msk [vmem:[%s5] sm:$0x3] %vm819, %v818
  // Predicated region
  $region26: #{rk4_rollout.1} parent=0 // pred_check
    _
  $region27: #{rk4_rollout.1} parent=0 // pred_check_branch
    %823 = sbr.rel (0) target = $region29
  $region28: #{rk4_rollout.1} parent=0 // pred_region
    _
  $region29: #{rk4_rollout.1} parent=0 // pred_fallthru
    _
  // Predicated region
  $region30: #{rk4_rollout.1} parent=0 // pred_check
    _
  $region31: #{rk4_rollout.1} parent=0 // pred_check_branch
    %825 = sbr.rel (0) target = $region33
  $region32: #{rk4_rollout.1} parent=0 // pred_region
    _
  $region33: #{rk4_rollout.1} parent=0 // pred_fallthru
    _

</llo_original>
